<compile_context>
chip_gen: v7x
topology: tpu7x:2x2x1
jax: 0.10.0
libtpu: 0.0.40
codegen_flags: <defaults>
</compile_context>

<pallas_src>
import functools

import jax
import jax.numpy as jnp
from jax.experimental import pallas as pl
from jax.experimental.pallas import tpu as pltpu

# Minimum number of elements in a single-block problem before we split the
# batch block to feed both v7x TensorCores.
_MEGACORE_MIN_ELEMS = 1 << 15


def _clip(v, lo, hi):
    return jnp.minimum(jnp.maximum(v, lo), hi)


def _round_up(a, m):
    return (a + m - 1) // m * m


# --------------------------------- kernels ----------------------------------
def _gaus2d_rho_kernel(params_ref, gx_ref, gy_ref, o_ref, *,
                       min_std, max_std, pos_limit):
    # from_rho path: params rows are (x, y, var_x, var_y, covar_xy)
    p = params_ref[...]                                   # (bb, 5) f32
    x = _clip(p[:, 0:1], -pos_limit, pos_limit)           # (bb, 1)
    y = _clip(p[:, 1:2], -pos_limit, pos_limit)
    var_x = _clip(p[:, 2:3], min_std * min_std, max_std * max_std)
    var_y = _clip(p[:, 3:4], min_std * min_std, max_std * max_std)
    covar = _clip(p[:, 4:5], -max_std * max_std, max_std * max_std)

    # Per-batch (bb, 1) scalar folding: all divides plus the -1/denom factor
    # live here, so the (bb, tn) hot path is ~10 VALU ops + one EUP exp.
    inv_vx = 1.0 / var_x
    inv_vy = 1.0 / var_y
    inv_vxvy = inv_vx * inv_vy
    denom = jnp.maximum(2.0 * (1.0 - covar * covar * inv_vxvy), 1e-8)
    neg_inv_denom = -1.0 / denom                          # < 0
    a = inv_vx * neg_inv_denom                            # (bb, 1)
    b = inv_vy * neg_inv_denom
    c = -2.0 * covar * inv_vxvy * neg_inv_denom
    # Z >= 1e-8 on the unfolded form  <=>  arg <= 1e-8 * neg_inv_denom.
    arg_cap = 1e-8 * neg_inv_denom                        # (bb, 1)

    gx = gx_ref[...]                                      # (1, tn)
    gy = gy_ref[...]
    dx = gx - x                                           # (bb, tn)
    dy = gy - y
    arg = dx * (a * dx + c * dy) + (b * dy) * dy          # = -Z/denom (unclipped)
    arg = jnp.minimum(arg, arg_cap)
    o_ref[...] = jnp.exp(arg).astype(o_ref.dtype)


def _gaus2d_rot_kernel(params_ref, gx_ref, gy_ref, o_ref, *,
                       min_std, max_std, pos_limit):
    # from_rot path: params rows are (x, y, std_x, std_y, rot_a, rot_b)
    p = params_ref[...]                                   # (bb, 6) f32
    x = _clip(p[:, 0:1], -pos_limit, pos_limit)           # (bb, 1)
    y = _clip(p[:, 1:2], -pos_limit, pos_limit)
    std_x = _clip(p[:, 2:3], min_std, max_std)
    std_y = _clip(p[:, 3:4], min_std, max_std)
    rot_a = p[:, 4:5]
    rot_b = p[:, 5:6]

    # Per-batch folding: normalize the rotation and pre-scale it by
    # 1/(sqrt(2)*std), so the hot path needs no per-element scale/halve.
    inv_scale = 1.0 / jnp.sqrt(jnp.maximum(rot_a * rot_a + rot_b * rot_b, 1e-16))
    ka = rot_a * inv_scale
    kb = rot_b * inv_scale
    inv_sx = 1.0 / (jnp.sqrt(jnp.float32(2.0)) * std_x)   # (bb, 1)
    inv_sy = 1.0 / (jnp.sqrt(jnp.float32(2.0)) * std_y)
    a1 = ka * inv_sx
    b1 = kb * inv_sx
    a2 = ka * inv_sy
    b2 = kb * inv_sy

    gx = gx_ref[...]                                      # (1, tn)
    gy = gy_ref[...]
    dx = gx - x                                           # (bb, tn)
    dy = gy - y
    xr = a1 * dx - b1 * dy                                # x_rot / (sqrt(2)*std_x)
    yr = b2 * dx + a2 * dy                                # y_rot / (sqrt(2)*std_y)
    o_ref[...] = jnp.exp(-(xr * xr + yr * yr)).astype(o_ref.dtype)


# ------------------------------ tiling helpers -------------------------------
def _pick_spatial_tile(N, max_block_lanes):
    """Lane tile tn and padded extent n_pad (n_pad == N whenever possible)."""
    if N <= max_block_lanes:
        return N, N                       # full extent: allowed regardless of %128
    # Largest 128-multiple divisor of N that fits -> padding-free tiling.
    for d in range(max_block_lanes // 128, 0, -1):
        t = d * 128
        if N % t == 0:
            return t, N
    tn = max_block_lanes                  # fallback: pad the lane axis
    return tn, _round_up(N, tn)


def _pick_batch_tile(B, tn, block_target_bytes):
    """Sublane tile bb and padded extent b_pad (b_pad == B whenever possible)."""
    rows_target = max(8, (block_target_bytes // (tn * 4) // 8) * 8)
    if B <= rows_target:
        return B, B                       # single full-extent batch block
    # Largest multiple-of-8 divisor of B that fits -> padding-free tiling.
    for bb in range(rows_target, 7, -8):
        if B % bb == 0:
            return bb, B
    bb = rows_target                      # fallback: pad the batch axis
    return bb, _round_up(B, bb)


def _maybe_split_for_megacore(B, bb, n_spatial_blocks, tn):
    """If the grid collapsed to one block, split the batch so v7x's 2 TCs work."""
    if n_spatial_blocks > 1 or bb < B:
        return bb
    if B % 16 == 0 and B * tn >= _MEGACORE_MIN_ELEMS:
        return B // 2                     # multiple of 8 and divides B: no padding
    return bb


# --------------------------------- wrapper ----------------------------------
def complex_gaus2d(params, size, position_limit=1.0, max_std=0.5,
                   out_dtype=jnp.float32,
                   block_target_bytes=4 << 20, max_block_lanes=32768):
    """Equivalent of ComplexGaus2D(size=size).forward(params)."""
    H, W = size
    assert H > 1 and W > 1, "grid normalization divides by (dim - 1)"
    N = H * W
    min_std = 1.0 / min(H, W)
    B, C = params.shape
    assert 5 <= C <= 6

    tn, n_pad = _pick_spatial_tile(N, max_block_lanes)
    bb, b_pad = _pick_batch_tile(B, tn, block_target_bytes)
    bb = _maybe_split_for_megacore(B, bb, n_pad // tn, tn)

    p = params.astype(jnp.float32)
    if b_pad != B:
        p = jnp.pad(p, ((0, b_pad - B), (0, 0)))   # zero rows are numerically safe

    # Flattened, lane-dense coordinate rows (1, n_pad).
    gx_row = jnp.arange(W, dtype=jnp.float32) / (W - 1) * 2.0 - 1.0
    gy_row = jnp.arange(H, dtype=jnp.float32) / (H - 1) * 2.0 - 1.0
    gx_flat = jnp.tile(gx_row, H)                  # value at flat f = gx[f % W]
    gy_flat = jnp.repeat(gy_row, W)                # value at flat f = gy[f // W]
    if n_pad != N:
        gx_flat = jnp.pad(gx_flat, (0, n_pad - N))
        gy_flat = jnp.pad(gy_flat, (0, n_pad - N))
    gx_flat = gx_flat.reshape(1, n_pad)
    gy_flat = gy_flat.reshape(1, n_pad)

    if C == 5:
        body = functools.partial(_gaus2d_rho_kernel, min_std=min_std,
                                 max_std=max_std, pos_limit=position_limit)
        flops_per_elem = 10
    else:
        body = functools.partial(_gaus2d_rot_kernel, min_std=min_std,
                                 max_std=max_std, pos_limit=position_limit)
        flops_per_elem = 12

    # Spatial axis outermost: the (1, tn) coordinate blocks keep the same block
    # index across the inner batch axis, so they are only DMA'd when the
    # spatial block changes.
    grid = (n_pad // tn, b_pad // bb)

    out_itemsize = jnp.dtype(out_dtype).itemsize
    cost = pl.CostEstimate(
        flops=flops_per_elem * b_pad * n_pad,
        transcendentals=b_pad * n_pad,
        bytes_accessed=b_pad * n_pad * out_itemsize + b_pad * C * 4 + 2 * n_pad * 4,
    )

    out = pl.pallas_call(
        body,
        out_shape=jax.ShapeDtypeStruct((b_pad, n_pad), out_dtype),
        grid=grid,
        in_specs=[
            pl.BlockSpec((bb, C), lambda s, b: (b, 0)),     # params
            pl.BlockSpec((1, tn), lambda s, b: (0, s)),     # grid_x row
            pl.BlockSpec((1, tn), lambda s, b: (0, s)),     # grid_y row
        ],
        out_specs=pl.BlockSpec((bb, tn), lambda s, b: (b, s)),
        compiler_params=pltpu.CompilerParams(
            dimension_semantics=("parallel", "parallel"),
            vmem_limit_bytes=48 << 20),
        cost_estimate=cost,
    )(p, gx_flat, gy_flat)

    if b_pad != B or n_pad != N:
        out = out[:B, :N]                  # fallback path only
    return out.reshape(B, 1, H, W)


# ---------------- pure-JAX reference (for correctness check) ----------------
def _ref_forward(params, size, position_limit=1.0, max_std=0.5):
    H, W = size
    min_std = 1.0 / min(H, W)
    gx = jnp.arange(W, dtype=jnp.float32) / (W - 1) * 2.0 - 1.0
    gy = jnp.arange(H, dtype=jnp.float32) / (H - 1) * 2.0 - 1.0
    grid_x = jnp.broadcast_to(gx[None, :], (H, W))[None, None]
    grid_y = jnp.broadcast_to(gy[:, None], (H, W))[None, None]
    B, C = params.shape
    p = params.astype(jnp.float32)
    x = jnp.clip(p[:, 0:1], -position_limit, position_limit)[:, :, None, None]
    y = jnp.clip(p[:, 1:2], -position_limit, position_limit)[:, :, None, None]
    if C == 5:
        var_x = jnp.clip(p[:, 2:3], min_std ** 2, max_std ** 2)[:, :, None, None]
        var_y = jnp.clip(p[:, 3:4], min_std ** 2, max_std ** 2)[:, :, None, None]
        covar = jnp.clip(p[:, 4:5], -max_std ** 2, max_std ** 2)[:, :, None, None]
        dx = grid_x - x
        dy = grid_y - y
        z_x = dx ** 2 / var_x
        z_y = dy ** 2 / var_y
        z_xy = 2 * covar * dx * dy / (var_x * var_y)
        Z = jnp.clip(z_x + z_y - z_xy, min=1e-8)
        denom = jnp.clip(2 * (1 - covar ** 2 / (var_x * var_y)), min=1e-8)
        return jnp.exp(-Z / denom)
    else:
        std_x = jnp.clip(p[:, 2:3], min_std, max_std)[:, :, None, None]
        std_y = jnp.clip(p[:, 3:4], min_std, max_std)[:, :, None, None]
        rot_a = p[:, 4:5][:, :, None, None]
        rot_b = p[:, 5:6][:, :, None, None]
        scale = jnp.sqrt(jnp.clip(rot_a ** 2 + rot_b ** 2, min=1e-16))
        rot_a = rot_a / scale
        rot_b = rot_b / scale
        dx = grid_x - x
        dy = grid_y - y
        x_rot = rot_a * dx - rot_b * dy
        y_rot = rot_b * dx + rot_a * dy
        return jnp.exp(-(x_rot ** 2 / std_x ** 2 + y_rot ** 2 / std_y ** 2) / 2)


if __name__ == "__main__":
    key = jax.random.PRNGKey(0)
    k1, k2, k3, k4, k5 = jax.random.split(key, 5)

    # from_rho path (5 params), 16x16 -> padding-free single-block path.
    size = (16, 16)
    B = 2
    params5 = jax.random.uniform(k1, (B, 5), jnp.float32, minval=-0.8, maxval=0.8)
    out5 = jax.block_until_ready(complex_gaus2d(params5, size))
    ref5 = _ref_forward(params5, size)
    assert out5.shape == (B, 1, 16, 16)
    assert jnp.allclose(out5, ref5, atol=1e-5, rtol=1e-4)

    # from_rot path (6 params), 16x16.
    params6 = jax.random.uniform(k2, (B, 6), jnp.float32, minval=-0.8, maxval=0.8)
    out6 = jax.block_until_ready(complex_gaus2d(params6, size))
    ref6 = _ref_forward(params6, size)
    assert out6.shape == (B, 1, 16, 16)
    assert jnp.allclose(out6, ref6, atol=1e-5, rtol=1e-4)

    # Multi-block fallback path: batch 20 needs padding (20 -> 24) and the
    # spatial axis is tiled into two 128-lane blocks.
    B2 = 20
    params5b = jax.random.uniform(k3, (B2, 5), jnp.float32, minval=-0.8, maxval=0.8)
    out5b = jax.block_until_ready(
        complex_gaus2d(params5b, size, block_target_bytes=4096, max_block_lanes=128))
    ref5b = _ref_forward(params5b, size)
    assert out5b.shape == (B2, 1, 16, 16)
    assert jnp.allclose(out5b, ref5b, atol=1e-5, rtol=1e-4)

    # Non-128-multiple spatial size, odd batch (full-extent blocks, no padding).
    size2 = (24, 20)
    B3 = 5
    params6b = jax.random.uniform(k4, (B3, 6), jnp.float32, minval=-0.8, maxval=0.8)
    out6b = jax.block_until_ready(complex_gaus2d(params6b, size2))
    ref6b = _ref_forward(params6b, size2)
    assert out6b.shape == (B3, 1, 24, 20)
    assert jnp.allclose(out6b, ref6b, atol=1e-5, rtol=1e-4)

    # Megacore split path: single-block problem with B % 16 == 0 is split into
    # two padding-free batch blocks (grid (1, 2)).
    size3 = (32, 32)
    B4 = 32
    params6c = jax.random.uniform(k5, (B4, 6), jnp.float32, minval=-0.8, maxval=0.8)
    out6c = jax.block_until_ready(complex_gaus2d(params6c, size3))
    ref6c = _ref_forward(params6c, size3)
    assert out6c.shape == (B4, 1, 32, 32)
    assert jnp.allclose(out6c, ref6c, atol=1e-5, rtol=1e-4)

    # Optional bf16 store path (math stays f32, only the store narrows).
    out5_bf16 = jax.block_until_ready(
        complex_gaus2d(params5, size, out_dtype=jnp.bfloat16))
    assert out5_bf16.dtype == jnp.bfloat16
    assert jnp.allclose(out5_bf16.astype(jnp.float32), ref5, atol=2e-2, rtol=2e-2)

    print("KERNEL_OK")
</pallas_src>

<mosaic_0001>
module attributes {stable_mosaic.version = 11 : i64} {
  func.func @_gaus2d_rho_kernel(%arg0: i32, %arg1: i32, %arg2: memref<2x5xf32, #tpu.memory_space<vmem>>, %arg3: memref<1x256xf32, #tpu.memory_space<vmem>>, %arg4: memref<1x256xf32, #tpu.memory_space<vmem>>, %arg5: memref<2x256xf32, #tpu.memory_space<vmem>>) attributes {dimension_semantics = [#tpu.dimension_semantics<parallel>, #tpu.dimension_semantics<parallel>], iteration_bounds = array<i64: 1, 1>, scalar_prefetch = 0 : i64, scratch_operands = 0 : i64, tpu.core_type = #tpu.core_type<tc>, window_params = [{transform_indices = @transform_0, window_bounds = array<i64: 2, 5>}, {transform_indices = @transform_1, window_bounds = array<i64: 1, 256>}, {transform_indices = @transform_2, window_bounds = array<i64: 1, 256>}, {transform_indices = @transform_3, window_bounds = array<i64: 2, 256>}]} {
    %c0 = arith.constant 0 : index
    %c0_0 = arith.constant 0 : index
    %0 = vector.load %arg2[%c0, %c0_0] : memref<2x5xf32, #tpu.memory_space<vmem>>, vector<2x5xf32>
    %1 = vector.extract_strided_slice %0 {offsets = [0, 0], sizes = [2, 1], strides = [1, 1]} : vector<2x5xf32> to vector<2x1xf32>
    %cst = arith.constant -1.000000e+00 : f32
    %2 = vector.broadcast %cst : f32 to vector<2x1xf32>
    %3 = arith.maximumf %1, %2 : vector<2x1xf32>
    %cst_1 = arith.constant 1.000000e+00 : f32
    %4 = vector.broadcast %cst_1 : f32 to vector<2x1xf32>
    %5 = arith.minimumf %3, %4 : vector<2x1xf32>
    %6 = vector.extract_strided_slice %0 {offsets = [0, 1], sizes = [2, 1], strides = [1, 1]} : vector<2x5xf32> to vector<2x1xf32>
    %cst_2 = arith.constant -1.000000e+00 : f32
    %7 = vector.broadcast %cst_2 : f32 to vector<2x1xf32>
    %8 = arith.maximumf %6, %7 : vector<2x1xf32>
    %cst_3 = arith.constant 1.000000e+00 : f32
    %9 = vector.broadcast %cst_3 : f32 to vector<2x1xf32>
    %10 = arith.minimumf %8, %9 : vector<2x1xf32>
    %11 = vector.extract_strided_slice %0 {offsets = [0, 2], sizes = [2, 1], strides = [1, 1]} : vector<2x5xf32> to vector<2x1xf32>
    %cst_4 = arith.constant 3.906250e-03 : f32
    %12 = vector.broadcast %cst_4 : f32 to vector<2x1xf32>
    %13 = arith.maximumf %11, %12 : vector<2x1xf32>
    %cst_5 = arith.constant 2.500000e-01 : f32
    %14 = vector.broadcast %cst_5 : f32 to vector<2x1xf32>
    %15 = arith.minimumf %13, %14 : vector<2x1xf32>
    %16 = vector.extract_strided_slice %0 {offsets = [0, 3], sizes = [2, 1], strides = [1, 1]} : vector<2x5xf32> to vector<2x1xf32>
    %cst_6 = arith.constant 3.906250e-03 : f32
    %17 = vector.broadcast %cst_6 : f32 to vector<2x1xf32>
    %18 = arith.maximumf %16, %17 : vector<2x1xf32>
    %cst_7 = arith.constant 2.500000e-01 : f32
    %19 = vector.broadcast %cst_7 : f32 to vector<2x1xf32>
    %20 = arith.minimumf %18, %19 : vector<2x1xf32>
    %21 = vector.extract_strided_slice %0 {offsets = [0, 4], sizes = [2, 1], strides = [1, 1]} : vector<2x5xf32> to vector<2x1xf32>
    %cst_8 = arith.constant -2.500000e-01 : f32
    %22 = vector.broadcast %cst_8 : f32 to vector<2x1xf32>
    %23 = arith.maximumf %21, %22 : vector<2x1xf32>
    %cst_9 = arith.constant 2.500000e-01 : f32
    %24 = vector.broadcast %cst_9 : f32 to vector<2x1xf32>
    %25 = arith.minimumf %23, %24 : vector<2x1xf32>
    %cst_10 = arith.constant 1.000000e+00 : f32
    %26 = vector.broadcast %cst_10 : f32 to vector<2x1xf32>
    %27 = arith.divf %26, %15 : vector<2x1xf32>
    %cst_11 = arith.constant 1.000000e+00 : f32
    %28 = vector.broadcast %cst_11 : f32 to vector<2x1xf32>
    %29 = arith.divf %28, %20 : vector<2x1xf32>
    %30 = arith.mulf %27, %29 : vector<2x1xf32>
    %31 = arith.mulf %25, %25 : vector<2x1xf32>
    %32 = arith.mulf %31, %30 : vector<2x1xf32>
    %cst_12 = arith.constant 1.000000e+00 : f32
    %33 = vector.broadcast %cst_12 : f32 to vector<2x1xf32>
    %34 = arith.subf %33, %32 : vector<2x1xf32>
    %cst_13 = arith.constant 2.000000e+00 : f32
    %35 = vector.broadcast %cst_13 : f32 to vector<2x1xf32>
    %36 = arith.mulf %35, %34 : vector<2x1xf32>
    %cst_14 = arith.constant 9.99999993E-9 : f32
    %37 = vector.broadcast %cst_14 : f32 to vector<2x1xf32>
    %38 = arith.maximumf %36, %37 : vector<2x1xf32>
    %cst_15 = arith.constant -1.000000e+00 : f32
    %39 = vector.broadcast %cst_15 : f32 to vector<2x1xf32>
    %40 = arith.divf %39, %38 : vector<2x1xf32>
    %41 = arith.mulf %27, %40 : vector<2x1xf32>
    %42 = arith.mulf %29, %40 : vector<2x1xf32>
    %cst_16 = arith.constant -2.000000e+00 : f32
    %43 = vector.broadcast %cst_16 : f32 to vector<2x1xf32>
    %44 = arith.mulf %43, %25 : vector<2x1xf32>
    %45 = arith.mulf %44, %30 : vector<2x1xf32>
    %46 = arith.mulf %45, %40 : vector<2x1xf32>
    %cst_17 = arith.constant 9.99999993E-9 : f32
    %47 = vector.broadcast %cst_17 : f32 to vector<2x1xf32>
    %48 = arith.mulf %47, %40 : vector<2x1xf32>
    %c0_18 = arith.constant 0 : index
    %c0_19 = arith.constant 0 : index
    %49 = vector.load %arg3[%c0_18, %c0_19] : memref<1x256xf32, #tpu.memory_space<vmem>>, vector<1x256xf32>
    %c0_20 = arith.constant 0 : index
    %c0_21 = arith.constant 0 : index
    %50 = vector.load %arg4[%c0_20, %c0_21] : memref<1x256xf32, #tpu.memory_space<vmem>>, vector<1x256xf32>
    %51 = vector.broadcast %49 : vector<1x256xf32> to vector<2x256xf32>
    %52 = vector.broadcast %5 : vector<2x1xf32> to vector<2x256xf32>
    %53 = arith.subf %51, %52 : vector<2x256xf32>
    %54 = vector.broadcast %50 : vector<1x256xf32> to vector<2x256xf32>
    %55 = vector.broadcast %10 : vector<2x1xf32> to vector<2x256xf32>
    %56 = arith.subf %54, %55 : vector<2x256xf32>
    %57 = vector.broadcast %41 : vector<2x1xf32> to vector<2x256xf32>
    %58 = arith.mulf %57, %53 : vector<2x256xf32>
    %59 = vector.broadcast %46 : vector<2x1xf32> to vector<2x256xf32>
    %60 = arith.mulf %59, %56 : vector<2x256xf32>
    %61 = arith.addf %58, %60 : vector<2x256xf32>
    %62 = arith.mulf %53, %61 : vector<2x256xf32>
    %63 = vector.broadcast %42 : vector<2x1xf32> to vector<2x256xf32>
    %64 = arith.mulf %63, %56 : vector<2x256xf32>
    %65 = arith.mulf %64, %56 : vector<2x256xf32>
    %66 = arith.addf %62, %65 : vector<2x256xf32>
    %67 = vector.broadcast %48 : vector<2x1xf32> to vector<2x256xf32>
    %68 = arith.minimumf %66, %67 : vector<2x256xf32>
    %69 = math.exp %68 : vector<2x256xf32>
    %c0_22 = arith.constant 0 : index
    %c0_23 = arith.constant 0 : index
    %70 = vector.load %arg5[%c0_22, %c0_23] : memref<2x256xf32, #tpu.memory_space<vmem>>, vector<2x256xf32>
    tpu.vector_store %arg5[%c0_22, %c0_23], %69 {strides = array<i32>} : memref<2x256xf32, #tpu.memory_space<vmem>>, vector<2x256xf32>,
    return
  }
  func.func @transform_0(%arg0: i32, %arg1: i32) -> (i32, i32) {
    %c0_i32 = arith.constant 0 : i32
    %c0_i32_0 = arith.constant 0 : i32
    return %arg1, %c0_i32 : i32, i32
  }
  func.func @transform_1(%arg0: i32, %arg1: i32) -> (i32, i32) {
    %c0_i32 = arith.constant 0 : i32
    %c0_i32_0 = arith.constant 0 : i32
    return %c0_i32, %arg0 : i32, i32
  }
  func.func @transform_2(%arg0: i32, %arg1: i32) -> (i32, i32) {
    %c0_i32 = arith.constant 0 : i32
    %c0_i32_0 = arith.constant 0 : i32
    return %c0_i32, %arg0 : i32, i32
  }
  func.func @transform_3(%arg0: i32, %arg1: i32) -> (i32, i32) {
    %c0_i32 = arith.constant 0 : i32
    return %arg1, %arg0 : i32, i32
  }
}

</mosaic_0001>

<llo_original>
// kernel: tpu_custom_call.1
$region0: #{tpu_custom_call.1}
  #allocation0 [shape = 'u32[]', space=smem, size = 0x4, offset = 0x4, fixed_abs, tag = 'smem constant byte address 0x4 - core index']
  #allocation1 [shape = 'u32[144,128]{1,0:T(1,128)}', space=vmem, size = 0x12000, scoped, tag = 'internal scratch']
  %s0 = inlined_call_operand.hbm [shape: f32[2,5], index: 0, kind: input, shape index: {}]
  %s1 = inlined_call_operand.vmem [shape: f32[1,256], index: 1, kind: input, shape index: {}]
  %s2 = inlined_call_operand.vmem [shape: f32[1,256], index: 2, kind: input, shape index: {}]
  %s3 = inlined_call_operand.hbm [shape: f32[2,256], index: 3, kind: output, shape index: {}]
  %s4 = sld [smem:[#allocation0]]
  $region26: #{tpu_custom_call.1} parent=0
    _
  %s6 = ssub.s32 1, %s4
  %s7 = scalar_select 0, %s6, %s4
  $region1: #{tpu_custom_call.1} parent=0
    #allocation2 [shape = 'u8[1024]{0}', space=vmem, size = 0x400, scoped, tag = 'input window, operand 0, single buffered']
    #allocation3 [shape = 's32[1]{0}', space=sflag, size = 0x4, scoped, tag = 'scoped memory for tpu_custom_call.1']
    #allocation4 [shape = 's32[1]{0}', space=sflag, size = 0x4, scoped, tag = 'scoped memory for tpu_custom_call.1']
    #allocation5 [shape = 'u8[2048]{0}', space=vmem, size = 0x800, scoped, tag = 'output window, operand 0, single buffered']
    %8 = vsyncpa [#allocation3], 0
    %9 = vsyncpa [#allocation4], 0
    // Predicated region
    $region2: #{tpu_custom_call.1} parent=1 // pred_check
      _
    $region3: #{tpu_custom_call.1} parent=1 // pred_check_branch
      %11 = sbr.rel (0) target = $region5
    $region4: #{tpu_custom_call.1} parent=1 // pred_region
      %s13 = ssub.s32 32, 32
      %14 = vsyncadd [#allocation3], %s13
      %s16 = sshll.u32 [#allocation2], 4
      %s17 = int_to_ptr.vmem [resolvable:$true] %s16
      %19 = dma.hbm_to_vmem [thread:$0]  %s0, 32, %s17, [#allocation3]
    $region5: #{tpu_custom_call.1} parent=1 // pred_fallthru
      _
    // Predicated region
    $region6: #{tpu_custom_call.1} parent=1 // pred_check
      _
    $region7: #{tpu_custom_call.1} parent=1 // pred_check_branch
      %21 = sbr.rel (0) target = $region9
    $region8: #{tpu_custom_call.1} parent=1 // pred_region
      _
    $region9: #{tpu_custom_call.1} parent=1 // pred_fallthru
      _
    // Predicated region
    $region10: #{tpu_custom_call.1} parent=1 // pred_check
      _
    $region11: #{tpu_custom_call.1} parent=1 // pred_check_branch
      %23 = sbr.rel (0) target = $region13
    $region12: #{tpu_custom_call.1} parent=1 // pred_region
      _
    $region13: #{tpu_custom_call.1} parent=1 // pred_fallthru
      _
    // Predicated region
    $region14: #{tpu_custom_call.1} parent=1 // pred_check
      _
    $region15: #{tpu_custom_call.1} parent=1 // pred_check_branch
      %25 = sbr.rel (0) target = $region17
    $region16: #{tpu_custom_call.1} parent=1 // pred_region
      %26 = dma.done [#allocation3], 32
    $region17: #{tpu_custom_call.1} parent=1 // pred_fallthru
      _
    %v27 = vld [vmem:[#allocation2] sm:$0x3]
    %v28 = vmax.f32 %v27, -1.0
    %v29 = vmin.f32 %v28, 1.0
    %v30 = vmax.f32 %v27, 0.00390625
    %v31 = vmin.f32 %v30, 0.25
    %v32 = vmax.f32 %v27, -0.25
    %v33 = vmin.f32 %v32, 0.25
    %v34 = vrcp.pop %v31
    %v35 = vmul.f32 1.0, %v34
    %37 = vrot.lane.b32.xlu0 %v35, 127
    %v38 = vpop.permute.xlu0 %37
    %v40 = vmul.f32 %v35, %v38
    %v41 = vmul.f32 %v33, %v33
    %43 = vrot.lane.b32.xlu0 %v40, 2
    %v44 = vpop.permute.xlu0 %43
    %v46 = vmul.f32 %v41, %v44
    %v47 = vsub.f32 1.0, %v46
    %v48 = vmul.f32 %v47, 2.0
    %v49 = vmax.f32 %v48, 1e-08
    %v50 = vrcp.pop %v49
    %v51 = vmul.f32 -1.0, %v50
    %53 = vrot.lane.b32.xlu0 %v51, 126
    %v54 = vpop.permute.xlu0 %53
    %v56 = vmul.f32 %v35, %v54
    %57 = vrot.lane.b32.xlu0 %v51, 127
    %v58 = vpop.permute.xlu0 %57
    %v60 = vmul.f32 %v35, %v58
    %v61 = vmul.f32 %v33, -2.0
    %v62 = vmul.f32 %v61, %v44
    %v63 = vmul.f32 %v62, %v51
    %v64 = vmul.f32 %v51, 1e-08
    %v65 = vld [vmem:[%s1] sm:$0x3]
    %v66 = vld [vmem:[%s2] sm:$0x3]
    %v68 = vlaneseq
    %v69 = vshrl.u32 %v68, 7
    %v70 = vsub.s32 0, %v69
    %v71 = vrot.slane %v65, %v70
    %v72 = vlaneseq
    %v73 = vshrl.u32 %v72, 7
    %v74 = vsub.s32 1, %v73
    %v75 = vrot.slane %v65, %v74
    %79 = vset.pattern.permute.xlu0 0
    %80 = vperm.xlu0 %79, %v29
    %v81 = vpop.permute.xlu0 %80
    %v83 = vsub.f32 %v71, %v81
    %v84 = vsub.f32 %v75, %v81
    %v86 = vlaneseq
    %v87 = vshrl.u32 %v86, 7
    %v88 = vsub.s32 0, %v87
    %v89 = vrot.slane %v66, %v88
    %v90 = vlaneseq
    %v91 = vshrl.u32 %v90, 7
    %v92 = vsub.s32 1, %v91
    %v93 = vrot.slane %v66, %v92
    %96 = vset.pattern.permute.xlu0 1
    %97 = vperm.xlu0 %96, %v29
    %v98 = vpop.permute.xlu0 %97
    %v100 = vsub.f32 %v89, %v98
    %v101 = vsub.f32 %v93, %v98
    %103 = vset.pattern.permute.xlu0 2
    %104 = vperm.xlu0 %103, %v56
    %v105 = vpop.permute.xlu0 %104
    %v107 = vmul.f32 %v105, %v83
    %v108 = vmul.f32 %v105, %v84
    %110 = vset.pattern.permute.xlu0 4
    %111 = vperm.xlu0 %110, %v63
    %v112 = vpop.permute.xlu0 %111
    %v114 = vmul.f32 %v112, %v100
    %v115 = vmul.f32 %v112, %v101
    %v116 = vadd.f32 %v107, %v114
    %v117 = vadd.f32 %v108, %v115
    %v118 = vmul.f32 %v83, %v116
    %v119 = vmul.f32 %v84, %v117
    %121 = vset.pattern.permute.xlu0 3
    %122 = vperm.xlu0 %121, %v60
    %v123 = vpop.permute.xlu0 %122
    %v125 = vmul.f32 %v123, %v100
    %v126 = vmul.f32 %v123, %v101
    %v127 = vmul.f32 %v125, %v100
    %v128 = vmul.f32 %v126, %v101
    %v129 = vadd.f32 %v118, %v127
    %v130 = vadd.f32 %v119, %v128
    %132 = vset.pattern.permute.xlu0 4
    %133 = vperm.xlu0 %132, %v64
    %v134 = vpop.permute.xlu0 %133
    %v136 = vmin.f32 %v129, %v134
    %v137 = vmin.f32 %v130, %v134
    %v138 = vmul.f32 %v136, 1.442695
    %v139 = vpow.pop %v138
    %v140 = vmul.f32 %v137, 1.442695
    %v141 = vpow.pop %v140
    %v144 = vcombine.low %v139, %v141
    %v146 = vunpack.c.l.s4 1983009808
    %v147 = vunpack.c.0.s8 %v146
    %v148 = vlaneseq
    %v149 = vshrl.u32 %v148, 7
    %v150 = vsub.s32 %v147, %v149
    %v151 = vrot.slane %v144, %v150
    %153 = vst [vmem:[#allocation5] sm:$0xf] %v151
    // Predicated region
    $region18: #{tpu_custom_call.1} parent=1 // pred_check
      _
    $region19: #{tpu_custom_call.1} parent=1 // pred_check_branch
      %155 = sbr.rel (0) target = $region21
    $region20: #{tpu_custom_call.1} parent=1 // pred_region
      %s157 = ssub.s32 64, 64
      %158 = vsyncadd [#allocation4], %s157
      %s160 = sshll.u32 [#allocation5], 4
      %s161 = int_to_ptr.vmem [resolvable:$true] %s160
      %163 = dma.vmem_to_hbm [thread:$0]  %s161, 64, %s3, [#allocation4]
    $region21: #{tpu_custom_call.1} parent=1 // pred_fallthru
      _
    // Predicated region
    $region22: #{tpu_custom_call.1} parent=1 // pred_check
      _
    $region23: #{tpu_custom_call.1} parent=1 // pred_check_branch
      %165 = sbr.rel (0) target = $region25
    $region24: #{tpu_custom_call.1} parent=1 // pred_region
      %166 = dma.done [#allocation4], 64
    $region25: #{tpu_custom_call.1} parent=1 // pred_fallthru
      _
    %167 = vsyncpa [#allocation3], 1
    %168 = vsyncpa [#allocation4], 1

</llo_original>
